<compile_context>
chip_gen: v6e
topology: v6e:2x2x1
jax: 0.10.0
libtpu: 0.0.40
codegen_flags: <defaults>
</compile_context>

<pallas_src>
import math

import jax
import jax.numpy as jnp
from jax import lax
from jax.experimental import pallas as pl
from jax.experimental.pallas import tpu as pltpu


def _round_up(x, m):
    return (x + m - 1) // m * m


# ----------------------------------------------------------------------------
# Fused kernel: projection + '(nh nw e)' split, one output HBM pass.
#   grid = (row_blocks over B*H, nh)
#   x_ref: (th*W, C)        rows = (bh-row-in-tile, w) flattened
#   w_ref: (1, nw*E, C)     weight slice for the current `ih`
#   o_ref: (th, 1, W, nw*E) block of the (B*H, nh, W, nw*E) output view
# ----------------------------------------------------------------------------
def _fused_kernel(x_ref, w_ref, o_ref):
    th, _, W, nwE = o_ref.shape
    # (th*W, C) x (nw*E, C)^T  -> (th*W, nw*E), f32 accumulation on the MXU.
    y = lax.dot_general(
        x_ref[...],
        w_ref[0],
        dimension_numbers=(((1,), (1,)), ((), ())),
        preferred_element_type=jnp.float32,
    )
    # Row-major regroup of the row axis into (th, 1, W); lane dim unchanged.
    o_ref[...] = y.reshape(th, 1, W, nwE).astype(o_ref.dtype)


# ----------------------------------------------------------------------------
# Fallback kernel (used when W % 8 != 0): plain projection, rearrange in XLA.
# ----------------------------------------------------------------------------
def _matmul_kernel(x_ref, w_ref, o_ref):
    o_ref[...] = lax.dot_general(
        x_ref[...],
        w_ref[...],
        dimension_numbers=(((1,), (1,)), ((), ())),
        preferred_element_type=jnp.float32,
    ).astype(o_ref.dtype)


def token_split_without_skip(
    x,
    weight,
    *,
    out_features,
    patch_size=(2, 2),
    tm_target=1024,                 # sweep per chip (rows of the matmul per step)
    vmem_budget_bytes=8 * 1024 * 1024,
    compute_dtype=None,             # e.g. jnp.bfloat16 for bf16 MXU inputs
):
    """
    x:      (B, H, W, in_features)
    weight: (out_features * nh * nw, in_features)   (PyTorch Linear layout)
    returns (B, H*nh, W*nw, out_features)
    """
    nh, nw = patch_size
    B, H, W, C = x.shape
    E = out_features
    nwE = nw * E
    N = nh * nwE
    assert weight.shape == (N, C), (weight.shape, (N, C))

    out_dtype = x.dtype
    if compute_dtype is not None:
        x = x.astype(compute_dtype)
        weight = weight.astype(compute_dtype)
    xb = jnp.dtype(x.dtype).itemsize
    ob = jnp.dtype(out_dtype).itemsize

    compiler_params = pltpu.CompilerParams(
        dimension_semantics=("parallel", "arbitrary"),
        vmem_limit_bytes=32 * 1024 * 1024,
    )

    if W % 8 == 0:
        # ------------------ fused path ------------------
        BH = B * H
        align = 8 // math.gcd(W, 8)  # keeps (th*W) a multiple of 8 sublanes
        per_th = 2 * W * (C * xb + nwE * ob)        # double-buffered x + out
        w_bytes = 2 * nwE * C * xb                  # double-buffered weight slice
        th_cap = max(align, (vmem_budget_bytes - w_bytes) // max(per_th, 1))
        th = min(th_cap, max(1, tm_target // W))
        th = max(align, (th // align) * align)
        th = min(th, _round_up(BH, align))
        BHp = _round_up(BH, th)

        x3 = x.reshape(BH, W, C)
        if BHp != BH:
            x3 = jnp.pad(x3, ((0, BHp - BH), (0, 0), (0, 0)))
        x2d = x3.reshape(BHp * W, C)
        w3 = weight.reshape(nh, nwE, C)             # free row-major view

        out4 = pl.pallas_call(
            _fused_kernel,
            out_shape=jax.ShapeDtypeStruct((BHp, nh, W, nwE), out_dtype),
            grid_spec=pltpu.PrefetchScalarGridSpec(
                num_scalar_prefetch=0,
                grid=(BHp // th, nh),
                in_specs=[
                    # x block is identical across the inner `ih` axis, so it is
                    # only DMA'd once per row block.
                    pl.BlockSpec((th * W, C), lambda i, ih: (i, 0)),
                    pl.BlockSpec((1, nwE, C), lambda i, ih: (ih, 0, 0)),
                ],
                out_specs=pl.BlockSpec(
                    (th, 1, W, nwE), lambda i, ih: (i, ih, 0, 0)
                ),
            ),
            compiler_params=compiler_params,
        )(x2d, w3)

        # (B*H, nh, W, nw*E) is a pure row-major view of (B, H*nh, W*nw, E).
        return out4[:BH].reshape(B, H * nh, W * nw, E)

    # ------------------ fallback path (W not a multiple of 8) ------------------
    M = B * H * W
    per_row = 2 * (C * xb + N * ob)
    w_bytes = 2 * N * C * xb
    tm_cap = max(8, (vmem_budget_bytes - w_bytes) // max(per_row, 1))
    tm = max(8, (min(tm_cap, tm_target) // 8) * 8)
    tm = min(tm, _round_up(M, 8))
    Mp = _round_up(M, tm)

    x2d = x.reshape(M, C)
    if Mp != M:
        x2d = jnp.pad(x2d, ((0, Mp - M), (0, 0)))

    y2d = pl.pallas_call(
        _matmul_kernel,
        out_shape=jax.ShapeDtypeStruct((Mp, N), out_dtype),
        grid_spec=pltpu.PrefetchScalarGridSpec(
            num_scalar_prefetch=0,
            grid=(Mp // tm, 1),
            in_specs=[
                pl.BlockSpec((tm, C), lambda i, j: (i, 0)),
                pl.BlockSpec((N, C), lambda i, j: (0, 0)),
            ],
            out_specs=pl.BlockSpec((tm, N), lambda i, j: (i, 0)),
        ),
        compiler_params=compiler_params,
    )(x2d, weight)

    y = y2d[:M].reshape(B, H, W, nh, nw, E)
    y = jnp.transpose(y, (0, 1, 3, 2, 4, 5))
    return y.reshape(B, H * nh, W * nw, E)


if __name__ == "__main__":
    key = jax.random.PRNGKey(0)
    kx, kw = jax.random.split(key)

    B, H, W = 2, 8, 8
    in_features = 32
    out_features = 16
    patch = (2, 2)

    x = jax.random.normal(kx, (B, H, W, in_features), dtype=jnp.float32)
    # Deterministic synthetic Linear weight (bias=False), PyTorch layout (out, in).
    bound = 1.0 / math.sqrt(in_features)
    weight = jax.random.uniform(
        kw,
        (out_features * patch[0] * patch[1], in_features),
        minval=-bound,
        maxval=bound,
        dtype=jnp.float32,
    )

    out = token_split_without_skip(
        x, weight, out_features=out_features, patch_size=patch
    )
    out = jax.block_until_ready(out)

    # Pure-JAX reference.
    y_ref = jnp.einsum("bhwc,nc->bhwn", x, weight)
    y_ref = y_ref.reshape(B, H, W, patch[0], patch[1], out_features)
    y_ref = jnp.transpose(y_ref, (0, 1, 3, 2, 4, 5)).reshape(
        B, H * patch[0], W * patch[1], out_features
    )

    assert out.shape == (B, H * patch[0], W * patch[1], out_features), out.shape
    assert jnp.allclose(out, y_ref, atol=1e-5, rtol=1e-5)
    print("KERNEL_OK")
</pallas_src>

<mosaic_0001>
module attributes {stable_mosaic.version = 11 : i64} {
  func.func @_fused_kernel(%arg0: i32, %arg1: i32, %arg2: memref<128x32xf32, #tpu.memory_space<vmem>>, %arg3: memref<1x32x32xf32, #tpu.memory_space<vmem>>, %arg4: memref<16x1x8x32xf32, #tpu.memory_space<vmem>>) attributes {dimension_semantics = [#tpu.dimension_semantics<parallel>, #tpu.dimension_semantics<arbitrary>], iteration_bounds = array<i64: 1, 2>, scalar_prefetch = 0 : i64, scratch_operands = 0 : i64, tpu.core_type = #tpu.core_type<tc>, window_params = [{transform_indices = @transform_0, window_bounds = array<i64: 128, 32>}, {transform_indices = @transform_1, window_bounds = array<i64: 1, 32, 32>}, {transform_indices = @transform_2, window_bounds = array<i64: 16, 1, 8, 32>}]} {
    %c0 = arith.constant 0 : index
    %c0_0 = arith.constant 0 : index
    %0 = vector.load %arg2[%c0, %c0_0] : memref<128x32xf32, #tpu.memory_space<vmem>>, vector<128x32xf32>
    %c0_1 = arith.constant 0 : index
    %c0_2 = arith.constant 0 : index
    %c0_3 = arith.constant 0 : index
    %1 = vector.load %arg3[%c0_1, %c0_2, %c0_3] : memref<1x32x32xf32, #tpu.memory_space<vmem>>, vector<1x32x32xf32>
    %2 = vector.shape_cast %1 : vector<1x32x32xf32> to vector<32x32xf32>
    %cst = arith.constant dense<0.000000e+00> : vector<128x32xf32>
    %3 = tpu.matmul %0, %2, %cst {dimension_numbers = #tpu.dot_dimension_numbers<[1], [1], [0], [0], [0, 0, 1, 0], [], []>} : vector<128x32xf32>, vector<32x32xf32>, vector<128x32xf32> -> vector<128x32xf32>
    %4 = vector.shape_cast %3 : vector<128x32xf32> to vector<16x1x8x32xf32>
    %c0_4 = arith.constant 0 : index
    %c0_5 = arith.constant 0 : index
    %c0_6 = arith.constant 0 : index
    %c0_7 = arith.constant 0 : index
    %5 = vector.load %arg4[%c0_4, %c0_5, %c0_6, %c0_7] : memref<16x1x8x32xf32, #tpu.memory_space<vmem>>, vector<16x1x8x32xf32>
    tpu.vector_store %arg4[%c0_4, %c0_5, %c0_6, %c0_7], %4 {strides = array<i32>} : memref<16x1x8x32xf32, #tpu.memory_space<vmem>>, vector<16x1x8x32xf32>,
    return
  }
  func.func @transform_0(%arg0: i32, %arg1: i32) -> (i32, i32) {
    %c0_i32 = arith.constant 0 : i32
    %c0_i32_0 = arith.constant 0 : i32
    return %arg0, %c0_i32 : i32, i32
  }
  func.func @transform_1(%arg0: i32, %arg1: i32) -> (i32, i32, i32) {
    %c0_i32 = arith.constant 0 : i32
    %c0_i32_0 = arith.constant 0 : i32
    %c0_i32_1 = arith.constant 0 : i32
    return %arg1, %c0_i32, %c0_i32_0 : i32, i32, i32
  }
  func.func @transform_2(%arg0: i32, %arg1: i32) -> (i32, i32, i32, i32) {
    %c0_i32 = arith.constant 0 : i32
    %c0_i32_0 = arith.constant 0 : i32
    %c0_i32_1 = arith.constant 0 : i32
    return %arg0, %arg1, %c0_i32, %c0_i32_0 : i32, i32, i32, i32
  }
}

</mosaic_0001>

<llo_original>
// kernel: tpu_custom_call.1
$region0: #{tpu_custom_call.1}
  #allocation0 [shape = 'u32[]', space=smem, size = 0x4, offset = 0x4, fixed_abs, tag = 'smem constant byte address 0x4 - core index']
  #allocation1 [shape = 'u32[144,128]{1,0:T(1,128)}', space=vmem, size = 0x12000, scoped, tag = 'internal scratch']
  %s0 = inlined_call_operand.vmem [shape: f32[128,32], index: 0, kind: input, shape index: {}]
  %s1 = inlined_call_operand.vmem [shape: f32[2,32,32], index: 1, kind: input, shape index: {}]
  %s2 = inlined_call_operand.hbm [shape: f32[16,2,8,32], index: 2, kind: output, shape index: {}]
  %s3 = sld [smem:[#allocation0]]
  $region41: #{tpu_custom_call.1} parent=0
    _
  %s5 = ssub.s32 1, %s3
  %s6 = scalar_select 0, %s5, %s3
  $region1: #{tpu_custom_call.1} parent=0
    #allocation2 [shape = 'u8[131072]{0}', space=vmem, size = 0x20000, scoped, tag = 'output window, operand 0']
    #allocation3 [shape = 's32[2]{0}', space=sflag, size = 0x8, scoped, tag = 'scoped memory for tpu_custom_call.1']
    %7 = vsyncpa [#allocation3], 0
    %s8 = scalar_lea.sflag [#allocation3], 1
    %9 = vsyncpa %s8, 0
    loop: start=0, step=1, limit=4
    $region2: #{tpu_custom_call.1} parent=1 // loop_pre_header
      _
    $region3: #{tpu_custom_call.1} parent=1 // loop_header
      %s11 = sphi 0, %s15
      %p12 = scmp.ge.s32.totalorder %s11, 4
      %s18 = sphi 0, %s30
      %s19 = sphi 0, %s26
      %s20 = sphi 0, %s18
      %s21 = sphi 0, %s19
      %s22 = sphi 0, %s20
      %s23 = sphi 0, %s21
      %s33 = sphi 0, %s35
      %s36 = sphi 0, %s33
      %s37 = sphi 0, %s36
      %s53 = sphi 0, %s37
      %s59 = sphi 0, %s61
      %s62 = sphi 0, %s59
      %s63 = sphi 0, %s62
      %s79 = sphi 0, %s63
      %s87 = sphi 0, %s89
      %s90 = sphi 0, %s87
      %s91 = sphi 0, %s90
      %s107 = sphi 0, %s91
    $region4: #{tpu_custom_call.1} parent=1 // loop_header_branch
      %14 = sbr.rel (%p12) target = $region8
    $region5: #{tpu_custom_call.1} parent=1 // loop_body
      %s16 = ssub.s32 %s11, 1
      %s17 = ssub.s32 %s11, 2
      %s24 = sadd.s32 1, %s19
      %p25 = scmp.ge.s32.totalorder %s24, 2
      %s26 = scalar_select %p25, 0, %s24
      %s27 = sadd.s32 1, %s18
      %s28 = scalar_select %p25, %s27, %s18
      %p29 = scmp.ge.s32.totalorder %s28, 1
      %s30 = scalar_select %p29, 0, %s28
      %s31 = ssub.s32 %s18, %s30
      %p32 = scmp.eq.s32.totalorder %s31, 0
      %s34 = sadd.s32 %s33, 1
      %s35 = scalar_select %p32, %s33, %s34
      %p38 = pneg %p32
      %p39 = scmp.eq.s32.totalorder %s11, 1
      %p40 = por %p38, %p39
      %p41 = scmp.ne.s32.totalorder %s33, %s36
      %p42 = scmp.eq.s32.totalorder %s11, 0
      %p43 = por %p41, %p42
      %p44 = scmp.ne.s32.totalorder %s33, %s36
      %p45 = scmp.eq.s32.totalorder %s16, 1
      %p46 = por %p44, %p45
      %p47 = scmp.ne.s32.totalorder %s36, %s37
      %p48 = scmp.eq.s32.totalorder %s16, 0
      %p49 = por %p47, %p48
      %p50 = scmp.ne.s32.totalorder %s36, %s37
      %p51 = scmp.eq.s32.totalorder %s17, 1
      %p52 = por %p50, %p51
      %p54 = scmp.ne.s32.totalorder %s37, %s53
      %p55 = scmp.eq.s32.totalorder %s17, 0
      %p56 = por %p54, %p55
      %s57 = ssub.s32 %s19, %s26
      %p58 = scmp.eq.s32.totalorder %s57, 0
      %s60 = sadd.s32 %s59, 1
      %s61 = scalar_select %p58, %s59, %s60
      %p64 = pneg %p58
      %p65 = scmp.eq.s32.totalorder %s11, 1
      %p66 = por %p64, %p65
      %p67 = scmp.ne.s32.totalorder %s59, %s62
      %p68 = scmp.eq.s32.totalorder %s11, 0
      %p69 = por %p67, %p68
      %p70 = scmp.ne.s32.totalorder %s59, %s62
      %p71 = scmp.eq.s32.totalorder %s16, 1
      %p72 = por %p70, %p71
      %p73 = scmp.ne.s32.totalorder %s62, %s63
      %p74 = scmp.eq.s32.totalorder %s16, 0
      %p75 = por %p73, %p74
      %p76 = scmp.ne.s32.totalorder %s62, %s63
      %p77 = scmp.eq.s32.totalorder %s17, 1
      %p78 = por %p76, %p77
      %p80 = scmp.ne.s32.totalorder %s63, %s79
      %p81 = scmp.eq.s32.totalorder %s17, 0
      %p82 = por %p80, %p81
      %s83 = ssub.s32 %s18, %s30
      %s84 = ssub.s32 %s19, %s26
      %s85 = sor.u32 %s83, %s84
      %p86 = scmp.eq.s32.totalorder %s85, 0
      %s88 = sadd.s32 %s87, 1
      %s89 = scalar_select %p86, %s87, %s88
      %p92 = pneg %p86
      %p93 = scmp.eq.s32.totalorder %s11, 1
      %p94 = por %p92, %p93
      %p95 = scmp.ne.s32.totalorder %s87, %s90
      %p96 = scmp.eq.s32.totalorder %s11, 0
      %p97 = por %p95, %p96
      %p98 = scmp.ne.s32.totalorder %s87, %s90
      %p99 = scmp.eq.s32.totalorder %s16, 1
      %p100 = por %p98, %p99
      %p101 = scmp.ne.s32.totalorder %s90, %s91
      %p102 = scmp.eq.s32.totalorder %s16, 0
      %p103 = por %p101, %p102
      %p104 = scmp.ne.s32.totalorder %s90, %s91
      %p105 = scmp.eq.s32.totalorder %s17, 1
      %p106 = por %p104, %p105
      %p108 = scmp.ne.s32.totalorder %s91, %s107
      %p109 = scmp.eq.s32.totalorder %s17, 0
      %p110 = por %p108, %p109
      %p111 = scmp.le.s32.totalorder 1, %s11
      %p112 = scmp.lt.s32.totalorder %s11, 3
      %p113 = pnand %p111, %p112
      %p114 = pneg %p113
      // Predicated region
      $region9: #{tpu_custom_call.1} parent=5 // pred_check
        _
      $region10: #{tpu_custom_call.1} parent=5 // pred_check_branch
        %116 = sbr.rel (%p113) target = $region12
      $region11: #{tpu_custom_call.1} parent=5 // pred_region
        %s117 = ssub.s32 %s11, 1
        // Predicated region
        $region13: #{tpu_custom_call.1} parent=11 // pred_check
          %p118 = pneg %p49
        $region14: #{tpu_custom_call.1} parent=11 // pred_check_branch
          %120 = sbr.rel (%p118) target = $region16
        $region15: #{tpu_custom_call.1} parent=11 // pred_region
          %s121 = smul.u32 16, %s20
          %p122 = scmp.lt.s32.totalorder %s121, 15
          %s123 = scalar_select %p122, %s121, 15
          %s124 = smul.addr %s123, 8
          %s125 = scalar_lea.vmem %s0, %s124
          %s126 = smul.u32 16, %s20
        $region16: #{tpu_custom_call.1} parent=11 // pred_fallthru
          _
      $region12: #{tpu_custom_call.1} parent=5 // pred_fallthru
        _
      %p127 = scmp.lt.s32.totalorder %s11, 2
      // Predicated region
      $region17: #{tpu_custom_call.1} parent=5 // pred_check
        %p128 = pneg %p127
      $region18: #{tpu_custom_call.1} parent=5 // pred_check_branch
        %130 = sbr.rel (%p128) target = $region20
      $region19: #{tpu_custom_call.1} parent=5 // pred_region
        // Predicated region
        $region21: #{tpu_custom_call.1} parent=19 // pred_check
          %p131 = pneg %p69
        $region22: #{tpu_custom_call.1} parent=19 // pred_check_branch
          %133 = sbr.rel (%p131) target = $region24
        $region23: #{tpu_custom_call.1} parent=19 // pred_region
          %p134 = scmp.lt.s32.totalorder %s19, 1
          %s135 = scalar_select %p134, %s19, 1
          %s136 = smul.addr %s135, 4
          %s137 = smul.addr %s136, 8
          %s138 = scalar_lea.vmem %s1, %s137
        $region24: #{tpu_custom_call.1} parent=19 // pred_fallthru
          _
      $region20: #{tpu_custom_call.1} parent=5 // pred_fallthru
        _
      %p139 = scmp.le.s32.totalorder 1, %s11
      %p140 = scmp.lt.s32.totalorder %s11, 3
      %p141 = pnand %p139, %p140
      %p142 = pneg %p141
      // Predicated region
      $region25: #{tpu_custom_call.1} parent=5 // pred_check
        _
      $region26: #{tpu_custom_call.1} parent=5 // pred_check_branch
        %144 = sbr.rel (%p141) target = $region28
      $region27: #{tpu_custom_call.1} parent=5 // pred_region
        %s145 = ssub.s32 %s11, 1
        %s146 = smul.u32 16, %s20
        %p147 = scmp.lt.s32.totalorder %s146, 15
        %s148 = scalar_select %p147, %s146, 15
        %s149 = smul.addr %s148, 8
        %s150 = scalar_lea.vmem %s0, %s149
        %p151 = pneg %p49
        %p152 = pneg %p46
        %p153 = scmp.lt.s32.totalorder %s21, 1
        %s154 = scalar_select %p153, %s21, 1
        %s155 = smul.addr %s154, 4
        %s156 = smul.addr %s155, 8
        %s157 = scalar_lea.vmem %s1, %s156
        %p158 = pneg %p75
        %p159 = pneg %p72
        %p160 = pneg %p103
        %p161 = pneg %p100
        %s162 = sand.u32 %s90, 1
        %s163 = scalar_lea.sflag [#allocation3], %s162
        %s164 = sand.u32 %s90, 1
        %s165 = smul.addr %s164, 128
        %s166 = scalar_lea.vmem [#allocation2], %s165
        %s167 = smul.u32 16, %s20
        %p168 = scmp.lt.s32.totalorder %s167, 15
        %s169 = scalar_select %p168, %s167, 15
        %s170 = smul.addr %s169, 8
        %s171 = scalar_lea.vmem %s0, %s170
        %s172 = smul.u32 16, %s20
        %p173 = scmp.lt.s32.totalorder %s21, 1
        %s174 = scalar_select %p173, %s21, 1
        %s175 = smul.addr %s174, 4
        %s176 = smul.addr %s175, 8
        %s177 = scalar_lea.vmem %s1, %s176
        %s178 = smul.u32 16, %s20
        %v179 = vld [vmem:[%s171] sm:$0xff]
        %v180 = vld [vmem:[%s171 + $0x8] sm:$0xff]
        %v181 = vld [vmem:[%s171 + $0x10] sm:$0xff]
        %v182 = vld [vmem:[%s171 + $0x18] sm:$0xff]
        %v183 = vld [vmem:[%s171 + $0x20] sm:$0xff]
        %v184 = vld [vmem:[%s171 + $0x28] sm:$0xff]
        %v185 = vld [vmem:[%s171 + $0x30] sm:$0xff]
        %v186 = vld [vmem:[%s171 + $0x38] sm:$0xff]
        %v187 = vld [vmem:[%s171 + $0x40] sm:$0xff]
        %v188 = vld [vmem:[%s171 + $0x48] sm:$0xff]
        %v189 = vld [vmem:[%s171 + $0x50] sm:$0xff]
        %v190 = vld [vmem:[%s171 + $0x58] sm:$0xff]
        %v191 = vld [vmem:[%s171 + $0x60] sm:$0xff]
        %v192 = vld [vmem:[%s171 + $0x68] sm:$0xff]
        %v193 = vld [vmem:[%s171 + $0x70] sm:$0xff]
        %v194 = vld [vmem:[%s171 + $0x78] sm:$0xff]
        %v195 = vld [vmem:[%s177] sm:$0xff]
        %v196 = vld [vmem:[%s177 + $0x8] sm:$0xff]
        %v197 = vld [vmem:[%s177 + $0x10] sm:$0xff]
        %v198 = vld [vmem:[%s177 + $0x18] sm:$0xff]
        %vm199 = vcmask 261120
        %v201 = vsel %vm199, %v179, 0
        %v204 = vsel %vm199, %v180, 0
        %v207 = vsel %vm199, %v181, 0
        %v210 = vsel %vm199, %v182, 0
        %v213 = vsel %vm199, %v183, 0
        %v216 = vsel %vm199, %v184, 0
        %v219 = vsel %vm199, %v185, 0
        %v222 = vsel %vm199, %v186, 0
        %v225 = vsel %vm199, %v187, 0
        %v228 = vsel %vm199, %v188, 0
        %v231 = vsel %vm199, %v189, 0
        %v234 = vsel %vm199, %v190, 0
        %v237 = vsel %vm199, %v191, 0
        %v240 = vsel %vm199, %v192, 0
        %v243 = vsel %vm199, %v193, 0
        %v246 = vsel %vm199, %v194, 0
        %v249 = vsel %vm199, %v195, 0
        %v252 = vsel %vm199, %v196, 0
        %v255 = vsel %vm199, %v197, 0
        %v258 = vsel %vm199, %v198, 0
        %260 = vmatprep.subr.mxu0 0.0
        %261 = vmatpush1.xpose.msra.mxu0 0.0
        %262 = vmatprep.subr.mxu0 0.0
        %263 = vmatpush1.xpose.msra.mxu0 0.0
        %264 = vmatprep.subr.mxu0 0.0
        %265 = vmatpush1.xpose.msra.mxu0 0.0
        %266 = vmatprep.subr.mxu0 0.0
        %267 = vmatpush1.xpose.msra.mxu0 0.0
        %268 = vmatprep.subr.mxu0 0.0
        %269 = vmatpush1.xpose.msra.mxu0 0.0
        %270 = vmatprep.subr.mxu0 0.0
        %271 = vmatpush1.xpose.msra.mxu0 0.0
        %272 = vmatprep.subr.mxu0 0.0
        %273 = vmatpush1.xpose.msra.mxu0 0.0
        %274 = vmatprep.subr.mxu0 0.0
        %275 = vmatpush1.xpose.msra.mxu0 0.0
        %276 = vmatprep.subr.mxu0 0.0
        %277 = vmatpush1.xpose.msra.mxu0 0.0
        %278 = vmatprep.subr.mxu0 0.0
        %279 = vmatpush1.xpose.msra.mxu0 0.0
        %280 = vmatprep.subr.mxu0 0.0
        %281 = vmatpush1.xpose.msra.mxu0 0.0
        %282 = vmatprep.subr.mxu0 0.0
        %283 = vmatpush1.xpose.msra.mxu0 0.0
        %284 = vmatprep.subr.mxu0 0.0
        %285 = vmatpush1.xpose.msra.mxu0 %v258
        %286 = vmatprep.subr.mxu0 0.0
        %287 = vmatpush1.xpose.msra.mxu0 %v255
        %288 = vmatprep.subr.mxu0 0.0
        %289 = vmatpush1.xpose.msra.mxu0 %v252
        %290 = vmatprep.subr.mxu0 0.0
        %291 = vmatpush1.xpose.msra.mxu0 %v249
        %292 = vmatprep.subr.mxu0 0.0
        %293 = vmatpush2.xpose.msra.mxu0 0.0
        %294 = vmatprep.subr.mxu0 0.0
        %295 = vmatpush2.xpose.msra.mxu0 0.0
        %296 = vmatprep.subr.mxu0 0.0
        %297 = vmatpush2.xpose.msra.mxu0 0.0
        %298 = vmatprep.subr.mxu0 0.0
        %299 = vmatpush2.xpose.msra.mxu0 0.0
        %300 = vmatprep.subr.mxu0 0.0
        %301 = vmatpush2.xpose.msra.mxu0 0.0
        %302 = vmatprep.subr.mxu0 0.0
        %303 = vmatpush2.xpose.msra.mxu0 0.0
        %304 = vmatprep.subr.mxu0 0.0
        %305 = vmatpush2.xpose.msra.mxu0 0.0
        %306 = vmatprep.subr.mxu0 0.0
        %307 = vmatpush2.xpose.msra.mxu0 0.0
        %308 = vmatprep.subr.mxu0 0.0
        %309 = vmatpush2.xpose.msra.mxu0 0.0
        %310 = vmatprep.subr.mxu0 0.0
        %311 = vmatpush2.xpose.msra.mxu0 0.0
        %312 = vmatprep.subr.mxu0 0.0
        %313 = vmatpush2.xpose.msra.mxu0 0.0
        %314 = vmatprep.subr.mxu0 0.0
        %315 = vmatpush2.xpose.msra.mxu0 0.0
        %316 = vmatprep.subr.mxu0 0.0
        %317 = vmatpush2.xpose.msra.mxu0 0.0
        %318 = vmatprep.subr.mxu0 0.0
        %319 = vmatpush2.xpose.msra.mxu0 0.0
        %320 = vmatprep.subr.mxu0 0.0
        %321 = vmatpush2.xpose.msra.mxu0 0.0
        %322 = vmatprep.subr.mxu0 0.0
        %323 = vmatpush2.xpose.msra.mxu0 0.0
        %324 = vmatprep.mubr.f32.mxu0 0.0
        %325 = vmatmul.mubr.f32.gmra.mxu0 %v201
        %v326 = vpop.f32.mrf.mxu0
        %v327 = vadd.f32 0.0, %v326
        %v328 = vpop.f32.mrf.mxu0
        %329 = vmatprep.mubr.f32.mxu0 0.0
        %330 = vmatmul.mubr.f32.gmra.mxu0 %v204
        %v331 = vpop.f32.mrf.mxu0
        %v332 = vadd.f32 0.0, %v331
        %v333 = vpop.f32.mrf.mxu0
        %334 = vmatprep.mubr.f32.mxu0 0.0
        %335 = vmatmul.mubr.f32.gmra.mxu0 %v207
        %v336 = vpop.f32.mrf.mxu0
        %v337 = vadd.f32 0.0, %v336
        %v338 = vpop.f32.mrf.mxu0
        %339 = vmatprep.mubr.f32.mxu0 0.0
        %340 = vmatmul.mubr.f32.gmra.mxu0 %v210
        %v341 = vpop.f32.mrf.mxu0
        %v342 = vadd.f32 0.0, %v341
        %v343 = vpop.f32.mrf.mxu0
        %344 = vmatprep.mubr.f32.mxu0 0.0
        %345 = vmatmul.mubr.f32.gmra.mxu0 %v213
        %v346 = vpop.f32.mrf.mxu0
        %v347 = vadd.f32 0.0, %v346
        %v348 = vpop.f32.mrf.mxu0
        %349 = vmatprep.mubr.f32.mxu0 0.0
        %350 = vmatmul.mubr.f32.gmra.mxu0 %v216
        %v351 = vpop.f32.mrf.mxu0
        %v352 = vadd.f32 0.0, %v351
        %v353 = vpop.f32.mrf.mxu0
        %354 = vmatprep.mubr.f32.mxu0 0.0
        %355 = vmatmul.mubr.f32.gmra.mxu0 %v219
        %v356 = vpop.f32.mrf.mxu0
        %v357 = vadd.f32 0.0, %v356
        %v358 = vpop.f32.mrf.mxu0
        %359 = vmatprep.mubr.f32.mxu0 0.0
        %360 = vmatmul.mubr.f32.gmra.mxu0 %v222
        %v361 = vpop.f32.mrf.mxu0
        %v362 = vadd.f32 0.0, %v361
        %v363 = vpop.f32.mrf.mxu0
        %364 = vmatprep.mubr.f32.mxu0 0.0
        %365 = vmatmul.mubr.f32.gmra.mxu0 %v225
        %v366 = vpop.f32.mrf.mxu0
        %v367 = vadd.f32 0.0, %v366
        %v368 = vpop.f32.mrf.mxu0
        %369 = vmatprep.mubr.f32.mxu0 0.0
        %370 = vmatmul.mubr.f32.gmra.mxu0 %v228
        %v371 = vpop.f32.mrf.mxu0
        %v372 = vadd.f32 0.0, %v371
        %v373 = vpop.f32.mrf.mxu0
        %374 = vmatprep.mubr.f32.mxu0 0.0
        %375 = vmatmul.mubr.f32.gmra.mxu0 %v231
        %v376 = vpop.f32.mrf.mxu0
        %v377 = vadd.f32 0.0, %v376
        %v378 = vpop.f32.mrf.mxu0
        %379 = vmatprep.mubr.f32.mxu0 0.0
        %380 = vmatmul.mubr.f32.gmra.mxu0 %v234
        %v381 = vpop.f32.mrf.mxu0
        %v382 = vadd.f32 0.0, %v381
        %v383 = vpop.f32.mrf.mxu0
        %384 = vmatprep.mubr.f32.mxu0 0.0
        %385 = vmatmul.mubr.f32.gmra.mxu0 %v237
        %v386 = vpop.f32.mrf.mxu0
        %v387 = vadd.f32 0.0, %v386
        %v388 = vpop.f32.mrf.mxu0
        %389 = vmatprep.mubr.f32.mxu0 0.0
        %390 = vmatmul.mubr.f32.gmra.mxu0 %v240
        %v391 = vpop.f32.mrf.mxu0
        %v392 = vadd.f32 0.0, %v391
        %v393 = vpop.f32.mrf.mxu0
        %394 = vmatprep.mubr.f32.mxu0 0.0
        %395 = vmatmul.mubr.f32.gmra.mxu0 %v243
        %v396 = vpop.f32.mrf.mxu0
        %v397 = vadd.f32 0.0, %v396
        %v398 = vpop.f32.mrf.mxu0
        %399 = vmatprep.mubr.f32.mxu0 0.0
        %400 = vmatmul.mubr.f32.gmra.mxu0 %v246
        %v401 = vpop.f32.mrf.mxu0
        %v402 = vadd.f32 0.0, %v401
        %v403 = vpop.f32.mrf.mxu0
        %404 = vdwg.mxu0
        %405 = vst.msk [vmem:[%s166] sm:$0xff] %vm199, %v327
        %406 = vst.msk [vmem:[%s166 + $0x8] sm:$0xff] %vm199, %v332
        %407 = vst.msk [vmem:[%s166 + $0x10] sm:$0xff] %vm199, %v337
        %408 = vst.msk [vmem:[%s166 + $0x18] sm:$0xff] %vm199, %v342
        %409 = vst.msk [vmem:[%s166 + $0x20] sm:$0xff] %vm199, %v347
        %410 = vst.msk [vmem:[%s166 + $0x28] sm:$0xff] %vm199, %v352
        %411 = vst.msk [vmem:[%s166 + $0x30] sm:$0xff] %vm199, %v357
        %412 = vst.msk [vmem:[%s166 + $0x38] sm:$0xff] %vm199, %v362
        %413 = vst.msk [vmem:[%s166 + $0x40] sm:$0xff] %vm199, %v367
        %414 = vst.msk [vmem:[%s166 + $0x48] sm:$0xff] %vm199, %v372
        %415 = vst.msk [vmem:[%s166 + $0x50] sm:$0xff] %vm199, %v377
        %416 = vst.msk [vmem:[%s166 + $0x58] sm:$0xff] %vm199, %v382
        %417 = vst.msk [vmem:[%s166 + $0x60] sm:$0xff] %vm199, %v387
        %418 = vst.msk [vmem:[%s166 + $0x68] sm:$0xff] %vm199, %v392
        %419 = vst.msk [vmem:[%s166 + $0x70] sm:$0xff] %vm199, %v397
        %420 = vst.msk [vmem:[%s166 + $0x78] sm:$0xff] %vm199, %v402
        %s421 = sand.u32 %s90, 1
        %s422 = scalar_lea.sflag [#allocation3], %s421
        %s423 = sand.u32 %s90, 1
        %s424 = smul.addr %s423, 128
        %s425 = scalar_lea.vmem [#allocation2], %s424
        // Predicated region
        $region29: #{tpu_custom_call.1} parent=27 // pred_check
          %p426 = pneg %p100
        $region30: #{tpu_custom_call.1} parent=27 // pred_check_branch
          %428 = sbr.rel (%p426) target = $region32
        $region31: #{tpu_custom_call.1} parent=27 // pred_region
          %s429 = smul.u32 16, %s20
          %s431 = ssub.s32 2048, 2048
          %432 = vsyncadd %s422, %s431
          %s433 = smul.addr %s429, 2
          %s434 = sadd.s32 %s21, %s433
          %s435 = smul.addr %s434, 128
          %s436 = scalar_lea.hbm %s2, %s435
          %s437 = sshll.u32 %s425, 4
          %s438 = int_to_ptr.vmem [resolvable:$true] %s437
          %443 = dma.vmem_to_hbm [thread:$0]  %s438, 2048, %s436, %s422, 128, 256, 8
        $region32: #{tpu_custom_call.1} parent=27 // pred_fallthru
          _
      $region28: #{tpu_custom_call.1} parent=5 // pred_fallthru
        _
      %p444 = scmp.le.s32.totalorder 2, %s11
      // Predicated region
      $region33: #{tpu_custom_call.1} parent=5 // pred_check
        %p445 = pneg %p444
      $region34: #{tpu_custom_call.1} parent=5 // pred_check_branch
        %447 = sbr.rel (%p445) target = $region36
      $region35: #{tpu_custom_call.1} parent=5 // pred_region
        %s448 = ssub.s32 %s11, 2
        // Predicated region
        $region37: #{tpu_custom_call.1} parent=35 // pred_check
          %p449 = pneg %p106
        $region38: #{tpu_custom_call.1} parent=35 // pred_check_branch
          %451 = sbr.rel (%p449) target = $region40
        $region39: #{tpu_custom_call.1} parent=35 // pred_region
          %s452 = sand.u32 %s91, 1
          %s453 = scalar_lea.sflag [#allocation3], %s452
          %s454 = sand.u32 %s91, 1
          %s455 = smul.addr %s454, 128
          %s456 = scalar_lea.vmem [#allocation2], %s455
          %457 = dma.done %s453, 2048
        $region40: #{tpu_custom_call.1} parent=35 // pred_fallthru
          _
      $region36: #{tpu_custom_call.1} parent=5 // pred_fallthru
        _
    $region6: #{tpu_custom_call.1} parent=1 // loop_footer
      %s15 = sadd.s32 1, %s11
    $region7: #{tpu_custom_call.1} parent=1 // loop_footer_branch
      %10 = sbr.rel target = $region3
    $region8: #{tpu_custom_call.1} parent=1 // loop_exit
      _
    %458 = vsyncpa [#allocation3], 1
    %s459 = scalar_lea.sflag [#allocation3], 1
    %460 = vsyncpa %s459, 1

</llo_original>
